<compile_context>
chip_gen: v5e
topology: v5e:2x2
jax: 0.10.0
libtpu: 0.0.40
codegen_flags: <defaults>
</compile_context>

<pallas_src>
import jax
import jax.numpy as jnp
from jax.experimental import pallas as pl
from jax.experimental.pallas import tpu as pltpu

# Lane-dense last-dim candidates (widest first). 128 is the minimum legal
# lane width; wider rows shave per-row loop/store bookkeeping for free.
_LANE_WIDTHS = (1024, 512, 256, 128)

# ~8 MiB per block: per-grid-step overhead (~0.35 us) stays <~5% of step time
# even at v7x HBM bandwidth, and double-buffered in+out (4x block = 32 MiB)
# fits under the explicit 48 MiB scoped-VMEM limit on every generation.
_TARGET_BLOCK_BYTES = 8 * 1024 * 1024
_VMEM_LIMIT_BYTES = 48 * 1024 * 1024


def _scale_kernel(scale_ref, x_ref, o_ref):
    # scale_ref: (1,) f32 scalar in SMEM; x_ref / o_ref: (tm, lanes) VMEM tiles.
    # Multiply in the native dtype: exact for f32, and for bf16/fp8 it avoids
    # per-vreg up/down converts and halves vreg footprint.
    o_ref[...] = (x_ref[...] * scale_ref[0].astype(x_ref.dtype)).astype(o_ref.dtype)


def scale_layer(x: jax.Array, scale: jax.Array) -> jax.Array:
    """y = x * scale (scalar broadcast), with the multiply in a Pallas kernel.

    x:     any-shaped float array (e.g. NCHW activations).
    scale: scalar parameter, shape (1,) like the PyTorch nn.Parameter.
    """
    orig_shape = x.shape
    orig_dtype = x.dtype
    total = x.size
    itemsize = jnp.dtype(orig_dtype).itemsize

    # Widest lane-dense last dim that exactly tiles the flat array (free
    # metadata reshape, no extra HBM traffic).
    lanes = next((w for w in _LANE_WIDTHS if total % w == 0 and total > 0), None)
    if lanes is None:
        # Misaligned (or empty) size: padding before the kernel + slicing after
        # would be ~3x the HBM traffic of this bandwidth-bound op. A plain
        # fused multiply is a single HBM pass — let XLA handle it.
        return (x * scale.astype(orig_dtype).reshape(())).astype(orig_dtype)

    rows = total // lanes
    x2d = jnp.ravel(x).reshape(rows, lanes)

    # Row tile sized for ~8 MiB blocks; multiple of 32 rows so full blocks are
    # sublane-aligned for f32 (8), bf16 (16) and fp8 (32) packing. The partial
    # last block (cdiv grid) is masked by Pallas.
    tm = _TARGET_BLOCK_BYTES // (lanes * itemsize)
    tm = max(32, (tm // 32) * 32)
    if rows <= tm:
        tm = rows                     # single block == full dims (always legal)
        grid = (1,)
    else:
        grid = (pl.cdiv(rows, tm),)

    scale_smem = scale.astype(jnp.float32).reshape(1)

    out2d = pl.pallas_call(
        _scale_kernel,
        out_shape=jax.ShapeDtypeStruct((rows, lanes), orig_dtype),
        grid=grid,
        in_specs=[
            pl.BlockSpec(memory_space=pltpu.MemorySpace.SMEM),   # scale scalar
            pl.BlockSpec((tm, lanes), lambda i: (i, 0)),         # x tile
        ],
        out_specs=pl.BlockSpec((tm, lanes), lambda i: (i, 0)),
        compiler_params=pltpu.CompilerParams(
            dimension_semantics=("parallel",),
            vmem_limit_bytes=_VMEM_LIMIT_BYTES,
        ),
        # TODO(synk): profile on v7x — if the single grid axis is not split
        # across both TensorCores, switch to pltpu.CORE_PARALLEL (or core_map)
        # to use both TCs' HBM paths; and note that the real bandwidth win is
        # fusing this multiply into the adjacent conv/activation rather than a
        # standalone HBM round trip.
    )(scale_smem, x2d)

    return out2d.reshape(orig_shape)


if __name__ == "__main__":
    key = jax.random.PRNGKey(0)

    # Small NCHW activation tensor consistent with a UNet feature map.
    x = jax.random.normal(key, (2, 4, 16, 16), dtype=jnp.float32)

    # Deterministic parameter init, matching nn.Parameter(torch.FloatTensor([0.1])).
    scale = jnp.array([0.1], dtype=jnp.float32)

    y = scale_layer(x, scale)
    y = jax.block_until_ready(y)

    # Correctness check against the trivial reference.
    ref = x * scale[0]
    assert y.shape == x.shape and y.dtype == x.dtype
    assert jnp.allclose(y, ref, atol=1e-6, rtol=1e-6)

    print("KERNEL_OK")
</pallas_src>

<mosaic_0001>
module attributes {stable_mosaic.version = 11 : i64} {
  func.func @_scale_kernel(%arg0: i32, %arg1: memref<1xf32, #tpu.memory_space<smem>>, %arg2: memref<2x1024xf32, #tpu.memory_space<vmem>>, %arg3: memref<2x1024xf32, #tpu.memory_space<vmem>>) attributes {dimension_semantics = [#tpu.dimension_semantics<parallel>], iteration_bounds = array<i64: 1>, scalar_prefetch = 0 : i64, scratch_operands = 0 : i64, tpu.core_type = #tpu.core_type<tc>, window_params = [{transform_indices = @transform_0, window_bounds = array<i64: 1>}, {transform_indices = @transform_1, window_bounds = array<i64: 2, 1024>}, {transform_indices = @transform_2, window_bounds = array<i64: 2, 1024>}]} {
    %c0 = arith.constant 0 : index
    %c0_0 = arith.constant 0 : index
    %0 = vector.load %arg2[%c0, %c0_0] : memref<2x1024xf32, #tpu.memory_space<vmem>>, vector<2x1024xf32>
    %c0_1 = arith.constant 0 : index
    %1 = memref.load %arg1[%c0_1] : memref<1xf32, #tpu.memory_space<smem>>
    %2 = vector.broadcast %1 : f32 to vector<2x1024xf32>
    %3 = arith.mulf %0, %2 : vector<2x1024xf32>
    %c0_2 = arith.constant 0 : index
    %c0_3 = arith.constant 0 : index
    %4 = vector.load %arg3[%c0_2, %c0_3] : memref<2x1024xf32, #tpu.memory_space<vmem>>, vector<2x1024xf32>
    tpu.vector_store %arg3[%c0_2, %c0_3], %3 {strides = array<i32>} : memref<2x1024xf32, #tpu.memory_space<vmem>>, vector<2x1024xf32>,
    return
  }
  func.func @transform_0(%arg0: i32) -> i32 {
    %c0_i32 = arith.constant 0 : i32
    %c0_i32_0 = arith.constant 0 : i32
    return %c0_i32 : i32
  }
  func.func @transform_1(%arg0: i32) -> (i32, i32) {
    %c0_i32 = arith.constant 0 : i32
    %c0_i32_0 = arith.constant 0 : i32
    return %arg0, %c0_i32 : i32, i32
  }
  func.func @transform_2(%arg0: i32) -> (i32, i32) {
    %c0_i32 = arith.constant 0 : i32
    %c0_i32_0 = arith.constant 0 : i32
    return %arg0, %c0_i32 : i32, i32
  }
}

</mosaic_0001>

<llo_original>
// kernel: tpu_custom_call.1
$region0: #{tpu_custom_call.1}
  #allocation0 [shape = 'u32[]', space=smem, size = 0x4, offset = 0x4, fixed_abs, tag = 'smem constant byte address 0x4 - core index']
  #allocation1 [shape = 'u32[72,128]{1,0:T(1,128)}', space=vmem, size = 0x9000, scoped, tag = 'internal scratch']
  #allocation2 [shape = 'f32[1]{0:T(128)S(6)}', space=smem, size = 0x200, scoped, tag = 'scoped memory for tpu_custom_call.1']
  %s0 = inlined_call_operand.<no memory space> [shape: f32[1], index: 0, kind: input, shape index: {}]
  %s1 = inlined_call_operand.hbm [shape: f32[2,1024], index: 1, kind: input, shape index: {}]
  %s2 = inlined_call_operand.hbm [shape: f32[2,1024], index: 2, kind: output, shape index: {}]
  %s3 = sld [smem:[#allocation0]]
  $region22: #{tpu_custom_call.1} parent=0
    _
  %s5 = ssub.s32 1, %s3
  %s6 = scalar_select 0, %s5, %s3
  %7 = sst [smem:[#allocation2]] %s0
  $region1: #{tpu_custom_call.1} parent=0
    #allocation3 [shape = 'u8[8192]{0}', space=vmem, size = 0x2000, scoped, tag = 'input window, operand 1, single buffered']
    #allocation4 [shape = 's32[1]{0}', space=sflag, size = 0x4, scoped, tag = 'scoped memory for tpu_custom_call.1']
    #allocation5 [shape = 's32[1]{0}', space=sflag, size = 0x4, scoped, tag = 'scoped memory for tpu_custom_call.1']
    #allocation6 [shape = 'u8[8192]{0}', space=vmem, size = 0x2000, scoped, tag = 'output window, operand 0, single buffered']
    %8 = vsyncpa [#allocation4], 0
    %9 = vsyncpa [#allocation5], 0
    // Predicated region
    $region2: #{tpu_custom_call.1} parent=1 // pred_check
      _
    $region3: #{tpu_custom_call.1} parent=1 // pred_check_branch
      %11 = sbr.rel (0) target = $region5
    $region4: #{tpu_custom_call.1} parent=1 // pred_region
      _
    $region5: #{tpu_custom_call.1} parent=1 // pred_fallthru
      _
    // Predicated region
    $region6: #{tpu_custom_call.1} parent=1 // pred_check
      _
    $region7: #{tpu_custom_call.1} parent=1 // pred_check_branch
      %13 = sbr.rel (0) target = $region9
    $region8: #{tpu_custom_call.1} parent=1 // pred_region
      %15 = vsyncadd [#allocation4], 0
      %s17 = sshll.u32 %s1, 4
      %s18 = int_to_ptr.hbm [resolvable:$true] %s17
      %s19 = sshll.u32 [#allocation3], 4
      %s20 = int_to_ptr.vmem [resolvable:$true] %s19
      %22 = dma.hbm_to_vmem [thread:$0]  %s18, 256, %s20, [#allocation4]
    $region9: #{tpu_custom_call.1} parent=1 // pred_fallthru
      _
    // Predicated region
    $region10: #{tpu_custom_call.1} parent=1 // pred_check
      _
    $region11: #{tpu_custom_call.1} parent=1 // pred_check_branch
      %24 = sbr.rel (0) target = $region13
    $region12: #{tpu_custom_call.1} parent=1 // pred_region
      %26 = dma.done [#allocation4], 256
    $region13: #{tpu_custom_call.1} parent=1 // pred_fallthru
      _
    %v27 = vld [vmem:[#allocation3] sm:$0xff]
    %v28 = vld [vmem:[#allocation3 + $0x8] sm:$0xff]
    %s29 = sld [smem:[#allocation2]]
    %v30 = vstv %s29
    %v31 = vmul.f32 %v27, %v30
    %v32 = vmul.f32 %v28, %v30
    %33 = vst [vmem:[#allocation6] sm:$0xff] %v31
    %34 = vst [vmem:[#allocation6 + $0x8] sm:$0xff] %v32
    // Predicated region
    $region14: #{tpu_custom_call.1} parent=1 // pred_check
      _
    $region15: #{tpu_custom_call.1} parent=1 // pred_check_branch
      %36 = sbr.rel (0) target = $region17
    $region16: #{tpu_custom_call.1} parent=1 // pred_region
      %38 = vsyncadd [#allocation5], 0
      %s40 = sshll.u32 [#allocation6], 4
      %s41 = int_to_ptr.vmem [resolvable:$true] %s40
      %s42 = sshll.u32 %s2, 4
      %s43 = int_to_ptr.hbm [resolvable:$true] %s42
      %45 = dma.vmem_to_hbm [thread:$0]  %s41, 256, %s43, [#allocation5]
    $region17: #{tpu_custom_call.1} parent=1 // pred_fallthru
      _
    // Predicated region
    $region18: #{tpu_custom_call.1} parent=1 // pred_check
      _
    $region19: #{tpu_custom_call.1} parent=1 // pred_check_branch
      %47 = sbr.rel (0) target = $region21
    $region20: #{tpu_custom_call.1} parent=1 // pred_region
      %49 = dma.done [#allocation5], 256
    $region21: #{tpu_custom_call.1} parent=1 // pred_fallthru
      _
    %50 = vsyncpa [#allocation4], 1
    %51 = vsyncpa [#allocation5], 1

</llo_original>
